<compile_context>
chip_gen: v6e
topology: v6e:2x2x1
jax: 0.10.0
libtpu: 0.0.40
codegen_flags: <defaults>
</compile_context>

<pallas_src>
import math
import functools
import warnings

import jax
import jax.numpy as jnp
from jax import lax
from jax.experimental import pallas as pl
from jax.experimental.pallas import tpu as pltpu


# ------------------------- in-kernel helpers -------------------------

def _layer_norm_f32(x, gamma, beta, eps=1e-12):
    mu = jnp.mean(x, axis=-1, keepdims=True)
    var = jnp.mean((x - mu) ** 2, axis=-1, keepdims=True)
    return (x - mu) * lax.rsqrt(var + eps) * gamma + beta


def _gelu_exact(x):
    # exact (erf) GELU, matching BERT's ACT2FN["gelu"]
    # TODO(synk): on v6e/v7x this could run in bf16 to halve the live [TQ, I] tile.
    return 0.5 * x * (1.0 + lax.erf(x * (1.0 / math.sqrt(2.0))))


# ------------------------- kernels -------------------------

def kv_proj_kernel(x_ref, wk_ref, bk_ref, wv_ref, bv_ref, k_ref, v_ref):
    """K / V projections for one (batch, seq-tile) block."""
    f32 = jnp.float32
    x = x_ref[0]                                                     # [TS, H] bf16
    k_ref[0] = (jnp.dot(x, wk_ref[...], preferred_element_type=f32)
                + bk_ref[...]).astype(k_ref.dtype)
    v_ref[0] = (jnp.dot(x, wv_ref[...], preferred_element_type=f32)
                + bv_ref[...]).astype(v_ref.dtype)


def cross_layer_kernel(xq_ref, k_ref, v_ref, mask_ref,
                       wq_ref, bq_ref, wo_ref, bo_ref, g1_ref, be1_ref,
                       wi_ref, bi_ref, w2_ref, b2_ref, g2_ref, be2_ref,
                       out_ref, *, num_heads):
    TQ = xq_ref.shape[1]
    H = xq_ref.shape[2]
    S = k_ref.shape[1]
    dh = H // num_heads
    scale = 1.0 / math.sqrt(dh)
    f32 = jnp.float32
    bf16 = jnp.bfloat16

    # --- CrossSelfAttention (this query tile; K/V precomputed) ---
    xq = xq_ref[0]                                                   # [TQ, H] bf16
    q = (jnp.dot(xq, wq_ref[...], preferred_element_type=f32)
         + bq_ref[...]).astype(bf16)                                 # [TQ, H]
    qh = q.reshape(TQ, num_heads, dh)
    kh = k_ref[0].reshape(S, num_heads, dh)
    vh = v_ref[0].reshape(S, num_heads, dh)

    # batched over heads: one MXU stream (no per-head 64-lane slices)
    s = jnp.einsum("qhd,khd->hqk", qh, kh,
                   preferred_element_type=f32) * scale               # [nh, TQ, S] f32
    s = s + mask_ref[...]                 # (1, 1, S) broadcasts over heads & queries
    s = s - jnp.max(s, axis=-1, keepdims=True)                       # softmax(dim=-1)
    p = jnp.exp(s)
    p = p * pl.reciprocal(jnp.sum(p, axis=-1, keepdims=True), approx=True)
    # attention-prob dropout: identity (eval mode)
    # context produced head-major then relaid out ONCE to a lane-dense [TQ, H] tensor
    ctx = jnp.einsum("hqk,khd->qhd", p.astype(bf16), vh,
                     preferred_element_type=f32)                     # [TQ, nh, dh]
    ctx = ctx.reshape(TQ, H).astype(bf16)                            # [TQ, H]

    # --- CrossSelfOutput: dense + dropout(id) + LayerNorm(h + input), fp32 stats ---
    attn = jnp.dot(ctx, wo_ref[...], preferred_element_type=f32) + bo_ref[...]
    attn = _layer_norm_f32(attn + xq.astype(f32), g1_ref[...], be1_ref[...])

    # --- CrossIntermediate + CrossOutput ---
    # TODO(synk): for v7x (64 MiB VMEM) at BERT-large scale, stream the intermediate
    # dim (tile wi[:, i0:i0+TI] / w2[i0:i0+TI, :]) instead of holding full FFN weights.
    inter = _gelu_exact(jnp.dot(attn.astype(bf16), wi_ref[...],
                                preferred_element_type=f32) + bi_ref[...])
    out = (jnp.dot(inter.astype(bf16), w2_ref[...], preferred_element_type=f32)
           + b2_ref[...])
    out = _layer_norm_f32(out + attn, g2_ref[...], be2_ref[...])

    out_ref[0] = out.astype(out_ref.dtype)


# ------------------------- pallas_call wrappers -------------------------

_HAS_BUFFERED = hasattr(pl, "Buffered")
_SINGLE_BUFFER_WEIGHTS = _HAS_BUFFERED


def _weight_spec(shape, single_buffer):
    kwargs = {}
    if single_buffer and _HAS_BUFFERED:
        # grid-invariant block: single-buffer to halve its VMEM footprint
        kwargs["pipeline_mode"] = pl.Buffered(1)
    return pl.BlockSpec(shape, lambda b, t, _n=len(shape): (0,) * _n, **kwargs)


def _vmem_limit(footprint_bytes):
    # footprint + 50% slack + fixed headroom for Mosaic internal scratch, clamped
    # below v7x's 64 MiB physical VMEM per TensorCore (v5e/v6e have 128 MiB).
    return int(min(max(int(footprint_bytes * 1.5) + (4 << 20), 16 << 20), 56 << 20))


def _layer_footprint_bytes(S, H, I, tq, num_heads, weight_bufs):
    bf16, f32 = 2, 4
    weights = weight_bufs * bf16 * (2 * H * H + 2 * H * I) + 2 * f32 * (6 * H + I)
    blocks = 2 * (2 * bf16 * tq * H + 2 * bf16 * S * H + f32 * S)   # xq/out, K/V, mask
    live = f32 * (2 * num_heads * tq * S + tq * I + 4 * tq * H)     # scores/probs/FFN
    return weights + blocks + live


def _kv_footprint_bytes(S, H, ts, weight_bufs):
    bf16, f32 = 2, 4
    weights = weight_bufs * 2 * bf16 * H * H + 2 * f32 * 2 * H
    blocks = 2 * 3 * bf16 * ts * H
    live = 2 * f32 * ts * H
    return weights + blocks + live


def _pick_query_tile(S, H, I, num_heads):
    weight_bufs = 1 if _HAS_BUFFERED else 2
    for cand in (256, 128, 64, 32, 16, 8):
        if (S % cand == 0 and
                _layer_footprint_bytes(S, H, I, cand, num_heads, weight_bufs)
                < (40 << 20)):
            return cand
    return S


def _kv_proj_call(x, p, ts, single_buffer):
    B, S, H = x.shape
    wb = 1 if (single_buffer and _HAS_BUFFERED) else 2
    seq_spec = pl.BlockSpec((1, ts, H), lambda b, st: (b, st, 0))
    ws = functools.partial(_weight_spec, single_buffer=single_buffer)
    return pl.pallas_call(
        kv_proj_kernel,
        out_shape=(jax.ShapeDtypeStruct((B, S, H), jnp.bfloat16),
                   jax.ShapeDtypeStruct((B, S, H), jnp.bfloat16)),
        grid=(B, S // ts),
        in_specs=[seq_spec,
                  ws((H, H)), ws((1, H)),                            # wk, bk
                  ws((H, H)), ws((1, H))],                           # wv, bv
        out_specs=(seq_spec, seq_spec),
        compiler_params=pltpu.CompilerParams(
            dimension_semantics=("parallel", "parallel"),
            vmem_limit_bytes=_vmem_limit(_kv_footprint_bytes(S, H, ts, wb)),
        ),
    )(x, p["wk"], p["bk"], p["wv"], p["bv"])


def _cross_layer_call(x, k, v, mask, p, num_heads, tq, single_buffer):
    B, S, H = x.shape
    I = p["wi"].shape[1]
    wb = 1 if (single_buffer and _HAS_BUFFERED) else 2
    ws = functools.partial(_weight_spec, single_buffer=single_buffer)

    in_specs = [
        pl.BlockSpec((1, tq, H), lambda b, qt: (b, qt, 0)),   # query tile
        pl.BlockSpec((1, S, H), lambda b, qt: (b, 0, 0)),     # K (full sequence)
        pl.BlockSpec((1, S, H), lambda b, qt: (b, 0, 0)),     # V (full sequence)
        pl.BlockSpec((1, 1, S), lambda b, qt: (b, 0, 0)),     # additive mask
        ws((H, H)), ws((1, H)),                               # wq, bq
        ws((H, H)), ws((1, H)),                               # wo, bo
        ws((1, H)), ws((1, H)),                               # LN1 gamma, beta
        ws((H, I)), ws((1, I)),                               # wi, bi
        ws((I, H)), ws((1, H)),                               # w2, b2
        ws((1, H)), ws((1, H)),                               # LN2 gamma, beta
    ]
    kernel = functools.partial(cross_layer_kernel, num_heads=num_heads)
    return pl.pallas_call(
        kernel,
        out_shape=jax.ShapeDtypeStruct((B, S, H), jnp.bfloat16),
        grid=(B, S // tq),
        in_specs=in_specs,
        out_specs=pl.BlockSpec((1, tq, H), lambda b, qt: (b, qt, 0)),
        compiler_params=pltpu.CompilerParams(
            dimension_semantics=("parallel", "parallel"),
            vmem_limit_bytes=_vmem_limit(
                _layer_footprint_bytes(S, H, I, tq, num_heads, wb)),
        ),
    )(x, k, v, mask,
      p["wq"], p["bq"], p["wo"], p["bo"], p["g1"], p["be1"],
      p["wi"], p["bi"], p["w2"], p["b2"], p["g2"], p["be2"])


def cross_layer_pallas(x, mask, p, num_heads, tq):
    """One CrossLayer forward: K/V projection kernel + fused attention/FFN kernel."""
    global _SINGLE_BUFFER_WEIGHTS

    def run(single_buffer):
        k, v = _kv_proj_call(x, p, tq, single_buffer)
        return _cross_layer_call(x, k, v, mask, p, num_heads, tq, single_buffer)

    if _SINGLE_BUFFER_WEIGHTS:
        try:
            return run(True)
        except Exception as e:  # noqa: BLE001
            # pl.Buffered(1) unsupported by this jax/Mosaic build: warn loudly (do not
            # silently hide) and retry double-buffered. A genuine kernel bug will
            # re-raise identically from the retry below, so bugs are not masked.
            warnings.warn(
                "single-buffered weight blocks unavailable; falling back to "
                f"double-buffered weights (doubles weight VMEM). Reason: {e}")
            _SINGLE_BUFFER_WEIGHTS = False
    return run(False)


def prepare_layer_params(p):
    """bf16 for the matmul weight matrices (MXU fast path, half the DMA/VMEM);
    biases and LayerNorm params stay fp32."""
    # TODO(synk): on v7x, the six large matrices could additionally be stored fp8
    # (e4m3) with per-output-channel scales to halve weight HBM traffic again.
    weights = ("wq", "wk", "wv", "wo", "wi", "w2")
    return {k: (v.astype(jnp.bfloat16) if k in weights else v.astype(jnp.float32))
            for k, v in p.items()}


def cross_encoder(x, mask, layer_params, num_heads, output_all_encoded_layers=True):
    B, S, H = x.shape
    I = layer_params[0]["wi"].shape[1]
    tq = _pick_query_tile(S, H, I, num_heads)
    assert S % tq == 0, "sequence length must be divisible by the query tile"
    h = x.astype(jnp.bfloat16)
    mask = mask.astype(jnp.float32)
    params = [prepare_layer_params(p) for p in layer_params]
    all_encoder_layers = []
    # TODO(synk): when output_all_encoded_layers=False, fuse the layer loop into one
    # pallas_call with a leading "layer" grid axis (layer-indexed weight index_maps)
    # so layer l+1's weight DMA overlaps layer l's compute (biggest win on v5e).
    for p in params:
        h = cross_layer_pallas(h, mask, p, num_heads, tq)
        if output_all_encoded_layers:
            all_encoder_layers.append(h)
    if not output_all_encoded_layers:
        all_encoder_layers.append(h)
    return all_encoder_layers


# ------------------------- pure-JAX fp32 reference -------------------------

def _ref_layer(x, mask, p, num_heads):
    B, S, H = x.shape
    dh = H // num_heads

    def lin(t, w, b):
        return t @ w + b[0]

    def ln(t, g, be):
        mu = t.mean(-1, keepdims=True)
        var = ((t - mu) ** 2).mean(-1, keepdims=True)
        return (t - mu) / jnp.sqrt(var + 1e-12) * g[0] + be[0]

    q = lin(x, p["wq"], p["bq"]).reshape(B, S, num_heads, dh).transpose(0, 2, 1, 3)
    k = lin(x, p["wk"], p["bk"]).reshape(B, S, num_heads, dh).transpose(0, 2, 1, 3)
    v = lin(x, p["wv"], p["bv"]).reshape(B, S, num_heads, dh).transpose(0, 2, 1, 3)
    s = jnp.einsum("bhqd,bhkd->bhqk", q, k) / math.sqrt(dh)
    s = s + mask[:, :, None, :]
    pr = jax.nn.softmax(s, axis=-1)
    ctx = jnp.einsum("bhqk,bhkd->bhqd", pr, v).transpose(0, 2, 1, 3).reshape(B, S, H)

    attn = ln(lin(ctx, p["wo"], p["bo"]) + x, p["g1"], p["be1"])
    pre = lin(attn, p["wi"], p["bi"])
    inter = 0.5 * pre * (1.0 + jax.lax.erf(pre / math.sqrt(2.0)))
    out = ln(lin(inter, p["w2"], p["b2"]) + attn, p["g2"], p["be2"])
    return out


# ------------------------- param init -------------------------

def init_layer_params(key, hidden, intermediate):
    ks = jax.random.split(key, 6)
    n = lambda k, shape: (0.02 * jax.random.normal(k, shape)).astype(jnp.float32)
    H, I = hidden, intermediate
    return {
        "wq": n(ks[0], (H, H)), "bq": jnp.zeros((1, H), jnp.float32),
        "wk": n(ks[1], (H, H)), "bk": jnp.zeros((1, H), jnp.float32),
        "wv": n(ks[2], (H, H)), "bv": jnp.zeros((1, H), jnp.float32),
        "wo": n(ks[3], (H, H)), "bo": jnp.zeros((1, H), jnp.float32),
        "g1": jnp.ones((1, H), jnp.float32), "be1": jnp.zeros((1, H), jnp.float32),
        "wi": n(ks[4], (H, I)), "bi": jnp.zeros((1, I), jnp.float32),
        "w2": n(ks[5], (I, H)), "b2": jnp.zeros((1, H), jnp.float32),
        "g2": jnp.ones((1, H), jnp.float32), "be2": jnp.zeros((1, H), jnp.float32),
    }


# ------------------------- main -------------------------

if __name__ == "__main__":
    B, S, H, NH, I, L = 2, 8, 32, 4, 64, 2

    key = jax.random.PRNGKey(0)
    k_x, k_p = jax.random.split(key)

    hidden_states = jax.random.normal(k_x, (B, S, H), dtype=jnp.float32)

    # binary mask -> additive extended mask [B, 1, S]
    binary = jnp.ones((B, S), jnp.float32).at[1, 5:].set(0.0)
    attention_mask = ((1.0 - binary) * -10000.0)[:, None, :]

    # one layer's params deep-copied across L layers (matches CrossEncoder.__init__)
    shared = init_layer_params(k_p, H, I)
    layer_params = [shared for _ in range(L)]

    outs = cross_encoder(hidden_states, attention_mask, layer_params, NH,
                         output_all_encoded_layers=True)
    outs = [jax.block_until_ready(o) for o in outs]

    # verify against the pure-JAX fp32 reference (kernel runs in bf16 -> loose tol;
    # the bf16 residual stream accumulates rounding across layers by design).
    ref = hidden_states
    for p in layer_params:
        ref = _ref_layer(ref, attention_mask, p, NH)

    final = outs[-1].astype(jnp.float32)
    assert len(outs) == L and outs[0].shape == (B, S, H)
    max_err = float(jnp.max(jnp.abs(final - ref)))
    assert jnp.allclose(final, ref, atol=1e-1, rtol=1e-1), (
        f"mismatch vs reference, max abs err = {max_err}")

    print("KERNEL_OK")
</pallas_src>

<mosaic_0001>
module attributes {stable_mosaic.version = 11 : i64} {
  func.func @kv_proj_kernel(%arg0: i32, %arg1: i32, %arg2: memref<1x8x32xbf16, #tpu.memory_space<vmem>>, %arg3: memref<32x32xbf16, #tpu.memory_space<vmem>>, %arg4: memref<1x32xf32, #tpu.memory_space<vmem>>, %arg5: memref<32x32xbf16, #tpu.memory_space<vmem>>, %arg6: memref<1x32xf32, #tpu.memory_space<vmem>>, %arg7: memref<1x8x32xbf16, #tpu.memory_space<vmem>>, %arg8: memref<1x8x32xbf16, #tpu.memory_space<vmem>>) attributes {dimension_semantics = [#tpu.dimension_semantics<parallel>, #tpu.dimension_semantics<parallel>], iteration_bounds = array<i64: 2, 1>, scalar_prefetch = 0 : i64, scratch_operands = 0 : i64, tpu.core_type = #tpu.core_type<tc>, window_params = [{transform_indices = @transform_0, window_bounds = array<i64: 1, 8, 32>}, {pipeline_mode = #tpu.pipeline_mode<synchronous>, transform_indices = @transform_1, window_bounds = array<i64: 32, 32>}, {pipeline_mode = #tpu.pipeline_mode<synchronous>, transform_indices = @transform_2, window_bounds = array<i64: 1, 32>}, {pipeline_mode = #tpu.pipeline_mode<synchronous>, transform_indices = @transform_3, window_bounds = array<i64: 32, 32>}, {pipeline_mode = #tpu.pipeline_mode<synchronous>, transform_indices = @transform_4, window_bounds = array<i64: 1, 32>}, {transform_indices = @transform_5, window_bounds = array<i64: 1, 8, 32>}, {transform_indices = @transform_6, window_bounds = array<i64: 1, 8, 32>}]} {
    %c0 = arith.constant 0 : index
    %c0_0 = arith.constant 0 : index
    %c0_1 = arith.constant 0 : index
    %0 = vector.load %arg2[%c0, %c0_0, %c0_1] : memref<1x8x32xbf16, #tpu.memory_space<vmem>>, vector<1x8x32xbf16>
    %1 = vector.shape_cast %0 : vector<1x8x32xbf16> to vector<8x32xbf16>
    %c0_2 = arith.constant 0 : index
    %c0_3 = arith.constant 0 : index
    %2 = vector.load %arg3[%c0_2, %c0_3] : memref<32x32xbf16, #tpu.memory_space<vmem>>, vector<32x32xbf16>
    %cst = arith.constant dense<0.000000e+00> : vector<8x32xf32>
    %3 = tpu.matmul %1, %2, %cst {dimension_numbers = #tpu.dot_dimension_numbers<[1], [0], [0], [1], [0, 0, 1, 1], [], []>} : vector<8x32xbf16>, vector<32x32xbf16>, vector<8x32xf32> -> vector<8x32xf32>
    %c0_4 = arith.constant 0 : index
    %c0_5 = arith.constant 0 : index
    %4 = vector.load %arg4[%c0_4, %c0_5] : memref<1x32xf32, #tpu.memory_space<vmem>>, vector<1x32xf32>
    %5 = vector.broadcast %4 : vector<1x32xf32> to vector<8x32xf32>
    %6 = arith.addf %3, %5 : vector<8x32xf32>
    %7 = arith.truncf %6 : vector<8x32xf32> to vector<8x32xbf16>
    %c0_6 = arith.constant 0 : index
    %c0_7 = arith.constant 0 : index
    %c0_8 = arith.constant 0 : index
    %8 = vector.load %arg7[%c0_6, %c0_7, %c0_8] : memref<1x8x32xbf16, #tpu.memory_space<vmem>>, vector<1x8x32xbf16>
    %9 = vector.shape_cast %8 : vector<1x8x32xbf16> to vector<8x32xbf16>
    %10 = vector.shape_cast %7 : vector<8x32xbf16> to vector<1x8x32xbf16>
    tpu.vector_store %arg7[%c0_6, %c0_7, %c0_8], %10 {strides = array<i32>} : memref<1x8x32xbf16, #tpu.memory_space<vmem>>, vector<1x8x32xbf16>,
    %c0_9 = arith.constant 0 : index
    %c0_10 = arith.constant 0 : index
    %11 = vector.load %arg5[%c0_9, %c0_10] : memref<32x32xbf16, #tpu.memory_space<vmem>>, vector<32x32xbf16>
    %cst_11 = arith.constant dense<0.000000e+00> : vector<8x32xf32>
    %12 = tpu.matmul %1, %11, %cst_11 {dimension_numbers = #tpu.dot_dimension_numbers<[1], [0], [0], [1], [0, 0, 1, 1], [], []>} : vector<8x32xbf16>, vector<32x32xbf16>, vector<8x32xf32> -> vector<8x32xf32>
    %c0_12 = arith.constant 0 : index
    %c0_13 = arith.constant 0 : index
    %13 = vector.load %arg6[%c0_12, %c0_13] : memref<1x32xf32, #tpu.memory_space<vmem>>, vector<1x32xf32>
    %14 = vector.broadcast %13 : vector<1x32xf32> to vector<8x32xf32>
    %15 = arith.addf %12, %14 : vector<8x32xf32>
    %16 = arith.truncf %15 : vector<8x32xf32> to vector<8x32xbf16>
    %c0_14 = arith.constant 0 : index
    %c0_15 = arith.constant 0 : index
    %c0_16 = arith.constant 0 : index
    %17 = vector.load %arg8[%c0_14, %c0_15, %c0_16] : memref<1x8x32xbf16, #tpu.memory_space<vmem>>, vector<1x8x32xbf16>
    %18 = vector.shape_cast %17 : vector<1x8x32xbf16> to vector<8x32xbf16>
    %19 = vector.shape_cast %16 : vector<8x32xbf16> to vector<1x8x32xbf16>
    tpu.vector_store %arg8[%c0_14, %c0_15, %c0_16], %19 {strides = array<i32>} : memref<1x8x32xbf16, #tpu.memory_space<vmem>>, vector<1x8x32xbf16>,
    return
  }
  func.func @transform_0(%arg0: i32, %arg1: i32) -> (i32, i32, i32) {
    %c0_i32 = arith.constant 0 : i32
    %c0_i32_0 = arith.constant 0 : i32
    return %arg0, %arg1, %c0_i32 : i32, i32, i32
  }
  func.func @transform_1(%arg0: i32, %arg1: i32) -> (i32, i32) {
    %c0_i32 = arith.constant 0 : i32
    %c0_i32_0 = arith.constant 0 : i32
    %c0_i32_1 = arith.constant 0 : i32
    return %c0_i32, %c0_i32_0 : i32, i32
  }
  func.func @transform_2(%arg0: i32, %arg1: i32) -> (i32, i32) {
    %c0_i32 = arith.constant 0 : i32
    %c0_i32_0 = arith.constant 0 : i32
    %c0_i32_1 = arith.constant 0 : i32
    return %c0_i32, %c0_i32_0 : i32, i32
  }
  func.func @transform_3(%arg0: i32, %arg1: i32) -> (i32, i32) {
    %c0_i32 = arith.constant 0 : i32
    %c0_i32_0 = arith.constant 0 : i32
    %c0_i32_1 = arith.constant 0 : i32
    return %c0_i32, %c0_i32_0 : i32, i32
  }
  func.func @transform_4(%arg0: i32, %arg1: i32) -> (i32, i32) {
    %c0_i32 = arith.constant 0 : i32
    %c0_i32_0 = arith.constant 0 : i32
    %c0_i32_1 = arith.constant 0 : i32
    return %c0_i32, %c0_i32_0 : i32, i32
  }
  func.func @transform_5(%arg0: i32, %arg1: i32) -> (i32, i32, i32) {
    %c0_i32 = arith.constant 0 : i32
    %c0_i32_0 = arith.constant 0 : i32
    return %arg0, %arg1, %c0_i32 : i32, i32, i32
  }
  func.func @transform_6(%arg0: i32, %arg1: i32) -> (i32, i32, i32) {
    %c0_i32 = arith.constant 0 : i32
    %c0_i32_0 = arith.constant 0 : i32
    return %arg0, %arg1, %c0_i32 : i32, i32, i32
  }
}

module attributes {stable_mosaic.version = 11 : i64} {
  func.func @kv_proj_kernel(%arg0: i32, %arg1: i32, %arg2: memref<1x8x32xbf16, #tpu.memory_space<vmem>>, %arg3: memref<32x32xbf16, #tpu.memory_space<vmem>>, %arg4: memref<1x32xf32, #tpu.memory_space<vmem>>, %arg5: memref<32x32xbf16, #tpu.memory_space<vmem>>, %arg6: memref<1x32xf32, #tpu.memory_space<vmem>>, %arg7: memref<1x8x32xbf16, #tpu.memory_space<vmem>>, %arg8: memref<1x8x32xbf16, #tpu.memory_space<vmem>>) attributes {dimension_semantics = [#tpu.dimension_semantics<parallel>, #tpu.dimension_semantics<parallel>], iteration_bounds = array<i64: 2, 1>, scalar_prefetch = 0 : i64, scratch_operands = 0 : i64, tpu.core_type = #tpu.core_type<tc>, window_params = [{transform_indices = @transform_0, window_bounds = array<i64: 1, 8, 32>}, {pipeline_mode = #tpu.pipeline_mode<synchronous>, transform_indices = @transform_1, window_bounds = array<i64: 32, 32>}, {pipeline_mode = #tpu.pipeline_mode<synchronous>, transform_indices = @transform_2, window_bounds = array<i64: 1, 32>}, {pipeline_mode = #tpu.pipeline_mode<synchronous>, transform_indices = @transform_3, window_bounds = array<i64: 32, 32>}, {pipeline_mode = #tpu.pipeline_mode<synchronous>, transform_indices = @transform_4, window_bounds = array<i64: 1, 32>}, {transform_indices = @transform_5, window_bounds = array<i64: 1, 8, 32>}, {transform_indices = @transform_6, window_bounds = array<i64: 1, 8, 32>}]} {
    %c0 = arith.constant 0 : index
    %c0_0 = arith.constant 0 : index
    %c0_1 = arith.constant 0 : index
    %0 = vector.load %arg2[%c0, %c0_0, %c0_1] : memref<1x8x32xbf16, #tpu.memory_space<vmem>>, vector<1x8x32xbf16>
    %1 = vector.shape_cast %0 : vector<1x8x32xbf16> to vector<8x32xbf16>
    %c0_2 = arith.constant 0 : index
    %c0_3 = arith.constant 0 : index
    %2 = vector.load %arg3[%c0_2, %c0_3] : memref<32x32xbf16, #tpu.memory_space<vmem>>, vector<32x32xbf16>
    %cst = arith.constant dense<0.000000e+00> : vector<8x32xf32>
    %3 = tpu.matmul %1, %2, %cst {dimension_numbers = #tpu.dot_dimension_numbers<[1], [0], [0], [1], [0, 0, 1, 1], [], []>} : vector<8x32xbf16>, vector<32x32xbf16>, vector<8x32xf32> -> vector<8x32xf32>
    %c0_4 = arith.constant 0 : index
    %c0_5 = arith.constant 0 : index
    %4 = vector.load %arg4[%c0_4, %c0_5] : memref<1x32xf32, #tpu.memory_space<vmem>>, vector<1x32xf32>
    %5 = vector.broadcast %4 : vector<1x32xf32> to vector<8x32xf32>
    %6 = arith.addf %3, %5 : vector<8x32xf32>
    %7 = arith.truncf %6 : vector<8x32xf32> to vector<8x32xbf16>
    %c0_6 = arith.constant 0 : index
    %c0_7 = arith.constant 0 : index
    %c0_8 = arith.constant 0 : index
    %8 = vector.load %arg7[%c0_6, %c0_7, %c0_8] : memref<1x8x32xbf16, #tpu.memory_space<vmem>>, vector<1x8x32xbf16>
    %9 = vector.shape_cast %8 : vector<1x8x32xbf16> to vector<8x32xbf16>
    %10 = vector.shape_cast %7 : vector<8x32xbf16> to vector<1x8x32xbf16>
    tpu.vector_store %arg7[%c0_6, %c0_7, %c0_8], %10 {strides = array<i32>} : memref<1x8x32xbf16, #tpu.memory_space<vmem>>, vector<1x8x32xbf16>,
    %c0_9 = arith.constant 0 : index
    %c0_10 = arith.constant 0 : index
    %11 = vector.load %arg5[%c0_9, %c0_10] : memref<32x32xbf16, #tpu.memory_space<vmem>>, vector<32x32xbf16>
    %cst_11 = arith.constant dense<0.000000e+00> : vector<8x32xf32>
    %12 = tpu.matmul %1, %11, %cst_11 {dimension_numbers = #tpu.dot_dimension_numbers<[1], [0], [0], [1], [0, 0, 1, 1], [], []>} : vector<8x32xbf16>, vector<32x32xbf16>, vector<8x32xf32> -> vector<8x32xf32>
    %c0_12 = arith.constant 0 : index
    %c0_13 = arith.constant 0 : index
    %13 = vector.load %arg6[%c0_12, %c0_13] : memref<1x32xf32, #tpu.memory_space<vmem>>, vector<1x32xf32>
    %14 = vector.broadcast %13 : vector<1x32xf32> to vector<8x32xf32>
    %15 = arith.addf %12, %14 : vector<8x32xf32>
    %16 = arith.truncf %15 : vector<8x32xf32> to vector<8x32xbf16>
    %c0_14 = arith.constant 0 : index
    %c0_15 = arith.constant 0 : index
    %c0_16 = arith.constant 0 : index
    %17 = vector.load %arg8[%c0_14, %c0_15, %c0_16] : memref<1x8x32xbf16, #tpu.memory_space<vmem>>, vector<1x8x32xbf16>
    %18 = vector.shape_cast %17 : vector<1x8x32xbf16> to vector<8x32xbf16>
    %19 = vector.shape_cast %16 : vector<8x32xbf16> to vector<1x8x32xbf16>
    tpu.vector_store %arg8[%c0_14, %c0_15, %c0_16], %19 {strides = array<i32>} : memref<1x8x32xbf16, #tpu.memory_space<vmem>>, vector<1x8x32xbf16>,
    return
  }
  func.func @transform_0(%arg0: i32, %arg1: i32) -> (i32, i32, i32) {
    %c0_i32 = arith.constant 0 : i32
    %c0_i32_0 = arith.constant 0 : i32
    return %arg0, %arg1, %c0_i32 : i32, i32, i32
  }
  func.func @transform_1(%arg0: i32, %arg1: i32) -> (i32, i32) {
    %c0_i32 = arith.constant 0 : i32
    %c0_i32_0 = arith.constant 0 : i32
    %c0_i32_1 = arith.constant 0 : i32
    return %c0_i32, %c0_i32_0 : i32, i32
  }
  func.func @transform_2(%arg0: i32, %arg1: i32) -> (i32, i32) {
    %c0_i32 = arith.constant 0 : i32
    %c0_i32_0 = arith.constant 0 : i32
    %c0_i32_1 = arith.constant 0 : i32
    return %c0_i32, %c0_i32_0 : i32, i32
  }
  func.func @transform_3(%arg0: i32, %arg1: i32) -> (i32, i32) {
    %c0_i32 = arith.constant 0 : i32
    %c0_i32_0 = arith.constant 0 : i32
    %c0_i32_1 = arith.constant 0 : i32
    return %c0_i32, %c0_i32_0 : i32, i32
  }
  func.func @transform_4(%arg0: i32, %arg1: i32) -> (i32, i32) {
    %c0_i32 = arith.constant 0 : i32
    %c0_i32_0 = arith.constant 0 : i32
    %c0_i32_1 = arith.constant 0 : i32
    return %c0_i32, %c0_i32_0 : i32, i32
  }
  func.func @transform_5(%arg0: i32, %arg1: i32) -> (i32, i32, i32) {
    %c0_i32 = arith.constant 0 : i32
    %c0_i32_0 = arith.constant 0 : i32
    return %arg0, %arg1, %c0_i32 : i32, i32, i32
  }
  func.func @transform_6(%arg0: i32, %arg1: i32) -> (i32, i32, i32) {
    %c0_i32 = arith.constant 0 : i32
    %c0_i32_0 = arith.constant 0 : i32
    return %arg0, %arg1, %c0_i32 : i32, i32, i32
  }
}

</mosaic_0001>

<llo_original>
// kernel: tpu_custom_call.1
$region0: #{tpu_custom_call.1}
  #allocation0 [shape = 'u32[]', space=smem, size = 0x4, offset = 0x4, fixed_abs, tag = 'smem constant byte address 0x4 - core index']
  #allocation1 [shape = 'u32[144,128]{1,0:T(1,128)}', space=vmem, size = 0x12000, scoped, tag = 'internal scratch']
  %s0 = inlined_call_operand.hbm [shape: bf16[2,8,32], index: 0, kind: input, shape index: {}]
  %s1 = inlined_call_operand.hbm [shape: bf16[32,32], index: 1, kind: input, shape index: {}]
  %s2 = inlined_call_operand.vmem [shape: f32[1,32], index: 2, kind: input, shape index: {}]
  %s3 = inlined_call_operand.hbm [shape: bf16[32,32], index: 3, kind: input, shape index: {}]
  %s4 = inlined_call_operand.vmem [shape: f32[1,32], index: 4, kind: input, shape index: {}]
  %s5 = inlined_call_operand.hbm [shape: bf16[2,8,32], index: 5, kind: output, shape index: {0}]
  %s6 = inlined_call_operand.hbm [shape: bf16[2,8,32], index: 6, kind: output, shape index: {1}]
  %7 = xla_tuple %s5, %s6
  %s8 = sld [smem:[#allocation0]]
  $region73: #{tpu_custom_call.1} parent=0
    _
  %s10 = ssub.s32 1, %s8
  %s11 = scalar_select 0, %s10, %s8
  $region1: #{tpu_custom_call.1} parent=0
    #allocation2 [shape = 'u8[4096]{0}', space=vmem, size = 0x1000, scoped, tag = 'input window, operand 0']
    #allocation3 [shape = 's32[2]{0}', space=sflag, size = 0x8, scoped, tag = 'scoped memory for tpu_custom_call.1']
    #allocation4 [shape = 's32[2]{0}', space=sflag, size = 0x8, scoped, tag = 'scoped memory for tpu_custom_call.1']
    #allocation5 [shape = 'u8[8192]{0}', space=vmem, size = 0x2000, scoped, tag = 'input window, operand 1, single buffered']
    #allocation6 [shape = 's32[1]{0}', space=sflag, size = 0x4, scoped, tag = 'scoped memory for tpu_custom_call.1']
    #allocation7 [shape = 'u8[8192]{0}', space=vmem, size = 0x2000, scoped, tag = 'input window, operand 3, single buffered']
    #allocation8 [shape = 'u8[4096]{0}', space=vmem, size = 0x1000, scoped, tag = 'output window, operand 0']
    #allocation9 [shape = 'u8[4096]{0}', space=vmem, size = 0x1000, scoped, tag = 'output window, operand 1']
    #allocation10 [shape = 's32[2]{0}', space=sflag, size = 0x8, scoped, tag = 'scoped memory for tpu_custom_call.1']
    %12 = vsyncpa [#allocation3], 0
    %s13 = scalar_lea.sflag [#allocation3], 1
    %14 = vsyncpa %s13, 0
    %15 = vsyncpa [#allocation6], 0
    %16 = vsyncpa [#allocation4], 0
    %s17 = scalar_lea.sflag [#allocation4], 1
    %18 = vsyncpa %s17, 0
    %19 = vsyncpa [#allocation10], 0
    %s20 = scalar_lea.sflag [#allocation10], 1
    %21 = vsyncpa %s20, 0
    loop: start=0, step=1, limit=4
    $region2: #{tpu_custom_call.1} parent=1 // loop_pre_header
      _
    $region3: #{tpu_custom_call.1} parent=1 // loop_header
      %s23 = sphi 0, %s27
      %p24 = scmp.ge.s32.totalorder %s23, 4
      %s30 = sphi 0, %s42
      %s31 = sphi 0, %s38
      %s32 = sphi 0, %s30
      %s33 = sphi 0, %s31
      %s34 = sphi 0, %s32
      %s35 = sphi 0, %s33
      %s47 = sphi 0, %s49
      %s50 = sphi 0, %s47
      %s51 = sphi 0, %s50
      %s67 = sphi 0, %s51
      %s71 = sphi 0, %s71
      %s73 = sphi 0, %s71
      %s74 = sphi 0, %s73
      %s88 = sphi 0, %s74
      %s92 = sphi 0, %s92
      %s94 = sphi 0, %s92
      %s95 = sphi 0, %s94
      %s109 = sphi 0, %s95
      %s113 = sphi 0, %s113
      %s115 = sphi 0, %s113
      %s116 = sphi 0, %s115
      %s130 = sphi 0, %s116
      %s134 = sphi 0, %s134
      %s136 = sphi 0, %s134
      %s137 = sphi 0, %s136
      %s151 = sphi 0, %s137
      %s159 = sphi 0, %s161
      %s162 = sphi 0, %s159
      %s163 = sphi 0, %s162
      %s179 = sphi 0, %s163
      %s187 = sphi 0, %s189
      %s190 = sphi 0, %s187
      %s191 = sphi 0, %s190
      %s207 = sphi 0, %s191
    $region4: #{tpu_custom_call.1} parent=1 // loop_header_branch
      %26 = sbr.rel (%p24) target = $region8
    $region5: #{tpu_custom_call.1} parent=1 // loop_body
      %s28 = ssub.s32 %s23, 1
      %s29 = ssub.s32 %s23, 2
      %s36 = sadd.s32 1, %s31
      %p37 = scmp.ge.s32.totalorder %s36, 1
      %s38 = scalar_select %p37, 0, %s36
      %s39 = sadd.s32 1, %s30
      %s40 = scalar_select %p37, %s39, %s30
      %p41 = scmp.ge.s32.totalorder %s40, 2
      %s42 = scalar_select %p41, 0, %s40
      %s43 = ssub.s32 %s30, %s42
      %s44 = ssub.s32 %s31, %s38
      %s45 = sor.u32 %s43, %s44
      %p46 = scmp.eq.s32.totalorder %s45, 0
      %s48 = sadd.s32 %s47, 1
      %s49 = scalar_select %p46, %s47, %s48
      %p52 = pneg %p46
      %p53 = scmp.eq.s32.totalorder %s23, 1
      %p54 = por %p52, %p53
      %p55 = scmp.ne.s32.totalorder %s47, %s50
      %p56 = scmp.eq.s32.totalorder %s23, 0
      %p57 = por %p55, %p56
      %p58 = scmp.ne.s32.totalorder %s47, %s50
      %p59 = scmp.eq.s32.totalorder %s28, 1
      %p60 = por %p58, %p59
      %p61 = scmp.ne.s32.totalorder %s50, %s51
      %p62 = scmp.eq.s32.totalorder %s28, 0
      %p63 = por %p61, %p62
      %p64 = scmp.ne.s32.totalorder %s50, %s51
      %p65 = scmp.eq.s32.totalorder %s29, 1
      %p66 = por %p64, %p65
      %p68 = scmp.ne.s32.totalorder %s51, %s67
      %p69 = scmp.eq.s32.totalorder %s29, 0
      %p70 = por %p68, %p69
      %s72 = sadd.s32 %s71, 1
      %p75 = scmp.eq.s32.totalorder %s23, 1
      %p76 = scmp.ne.s32.totalorder %s71, %s73
      %p77 = scmp.eq.s32.totalorder %s23, 0
      %p78 = por %p76, %p77
      %p79 = scmp.ne.s32.totalorder %s71, %s73
      %p80 = scmp.eq.s32.totalorder %s28, 1
      %p81 = por %p79, %p80
      %p82 = scmp.ne.s32.totalorder %s73, %s74
      %p83 = scmp.eq.s32.totalorder %s28, 0
      %p84 = por %p82, %p83
      %p85 = scmp.ne.s32.totalorder %s73, %s74
      %p86 = scmp.eq.s32.totalorder %s29, 1
      %p87 = por %p85, %p86
      %p89 = scmp.ne.s32.totalorder %s74, %s88
      %p90 = scmp.eq.s32.totalorder %s29, 0
      %p91 = por %p89, %p90
      %s93 = sadd.s32 %s92, 1
      %p96 = scmp.eq.s32.totalorder %s23, 1
      %p97 = scmp.ne.s32.totalorder %s92, %s94
      %p98 = scmp.eq.s32.totalorder %s23, 0
      %p99 = por %p97, %p98
      %p100 = scmp.ne.s32.totalorder %s92, %s94
      %p101 = scmp.eq.s32.totalorder %s28, 1
      %p102 = por %p100, %p101
      %p103 = scmp.ne.s32.totalorder %s94, %s95
      %p104 = scmp.eq.s32.totalorder %s28, 0
      %p105 = por %p103, %p104
      %p106 = scmp.ne.s32.totalorder %s94, %s95
      %p107 = scmp.eq.s32.totalorder %s29, 1
      %p108 = por %p106, %p107
      %p110 = scmp.ne.s32.totalorder %s95, %s109
      %p111 = scmp.eq.s32.totalorder %s29, 0
      %p112 = por %p110, %p111
      %s114 = sadd.s32 %s113, 1
      %p117 = scmp.eq.s32.totalorder %s23, 1
      %p118 = scmp.ne.s32.totalorder %s113, %s115
      %p119 = scmp.eq.s32.totalorder %s23, 0
      %p120 = por %p118, %p119
      %p121 = scmp.ne.s32.totalorder %s113, %s115
      %p122 = scmp.eq.s32.totalorder %s28, 1
      %p123 = por %p121, %p122
      %p124 = scmp.ne.s32.totalorder %s115, %s116
      %p125 = scmp.eq.s32.totalorder %s28, 0
      %p126 = por %p124, %p125
      %p127 = scmp.ne.s32.totalorder %s115, %s116
      %p128 = scmp.eq.s32.totalorder %s29, 1
      %p129 = por %p127, %p128
      %p131 = scmp.ne.s32.totalorder %s116, %s130
      %p132 = scmp.eq.s32.totalorder %s29, 0
      %p133 = por %p131, %p132
      %s135 = sadd.s32 %s134, 1
      %p138 = scmp.eq.s32.totalorder %s23, 1
      %p139 = scmp.ne.s32.totalorder %s134, %s136
      %p140 = scmp.eq.s32.totalorder %s23, 0
      %p141 = por %p139, %p140
      %p142 = scmp.ne.s32.totalorder %s134, %s136
      %p143 = scmp.eq.s32.totalorder %s28, 1
      %p144 = por %p142, %p143
      %p145 = scmp.ne.s32.totalorder %s136, %s137
      %p146 = scmp.eq.s32.totalorder %s28, 0
      %p147 = por %p145, %p146
      %p148 = scmp.ne.s32.totalorder %s136, %s137
      %p149 = scmp.eq.s32.totalorder %s29, 1
      %p150 = por %p148, %p149
      %p152 = scmp.ne.s32.totalorder %s137, %s151
      %p153 = scmp.eq.s32.totalorder %s29, 0
      %p154 = por %p152, %p153
      %s155 = ssub.s32 %s30, %s42
      %s156 = ssub.s32 %s31, %s38
      %s157 = sor.u32 %s155, %s156
      %p158 = scmp.eq.s32.totalorder %s157, 0
      %s160 = sadd.s32 %s159, 1
      %s161 = scalar_select %p158, %s159, %s160
      %p164 = pneg %p158
      %p165 = scmp.eq.s32.totalorder %s23, 1
      %p166 = por %p164, %p165
      %p167 = scmp.ne.s32.totalorder %s159, %s162
      %p168 = scmp.eq.s32.totalorder %s23, 0
      %p169 = por %p167, %p168
      %p170 = scmp.ne.s32.totalorder %s159, %s162
      %p171 = scmp.eq.s32.totalorder %s28, 1
      %p172 = por %p170, %p171
      %p173 = scmp.ne.s32.totalorder %s162, %s163
      %p174 = scmp.eq.s32.totalorder %s28, 0
      %p175 = por %p173, %p174
      %p176 = scmp.ne.s32.totalorder %s162, %s163
      %p177 = scmp.eq.s32.totalorder %s29, 1
      %p178 = por %p176, %p177
      %p180 = scmp.ne.s32.totalorder %s163, %s179
      %p181 = scmp.eq.s32.totalorder %s29, 0
      %p182 = por %p180, %p181
      %s183 = ssub.s32 %s30, %s42
      %s184 = ssub.s32 %s31, %s38
      %s185 = sor.u32 %s183, %s184
      %p186 = scmp.eq.s32.totalorder %s185, 0
      %s188 = sadd.s32 %s187, 1
      %s189 = scalar_select %p186, %s187, %s188
      %p192 = pneg %p186
      %p193 = scmp.eq.s32.totalorder %s23, 1
      %p194 = por %p192, %p193
      %p195 = scmp.ne.s32.totalorder %s187, %s190
      %p196 = scmp.eq.s32.totalorder %s23, 0
      %p197 = por %p195, %p196
      %p198 = scmp.ne.s32.totalorder %s187, %s190
      %p199 = scmp.eq.s32.totalorder %s28, 1
      %p200 = por %p198, %p199
      %p201 = scmp.ne.s32.totalorder %s190, %s191
      %p202 = scmp.eq.s32.totalorder %s28, 0
      %p203 = por %p201, %p202
      %p204 = scmp.ne.s32.totalorder %s190, %s191
      %p205 = scmp.eq.s32.totalorder %s29, 1
      %p206 = por %p204, %p205
      %p208 = scmp.ne.s32.totalorder %s191, %s207
      %p209 = scmp.eq.s32.totalorder %s29, 0
      %p210 = por %p208, %p209
      %p211 = scmp.le.s32.totalorder 1, %s23
      %p212 = scmp.lt.s32.totalorder %s23, 3
      %p213 = pnand %p211, %p212
      %p214 = pneg %p213
      // Predicated region
      $region9: #{tpu_custom_call.1} parent=5 // pred_check
        _
      $region10: #{tpu_custom_call.1} parent=5 // pred_check_branch
        %216 = sbr.rel (%p213) target = $region12
      $region11: #{tpu_custom_call.1} parent=5 // pred_region
        %s217 = ssub.s32 %s23, 1
        // Predicated region
        $region13: #{tpu_custom_call.1} parent=11 // pred_check
          %p218 = pneg %p84
        $region14: #{tpu_custom_call.1} parent=11 // pred_check_branch
          %220 = sbr.rel (%p218) target = $region16
        $region15: #{tpu_custom_call.1} parent=11 // pred_region
          %s222 = ssub.s32 256, 256
          %223 = vsyncadd [#allocation6], %s222
          %s224 = sshll.u32 [#allocation5], 4
          %s225 = int_to_ptr.vmem [resolvable:$true] %s224
          %230 = dma.hbm_to_vmem [thread:$0]  %s1, 256, %s225, [#allocation6], 64, 64, 4
        $region16: #{tpu_custom_call.1} parent=11 // pred_fallthru
          _
        // Predicated region
        $region17: #{tpu_custom_call.1} parent=11 // pred_check
          %p231 = pneg %p105
        $region18: #{tpu_custom_call.1} parent=11 // pred_check_branch
          %233 = sbr.rel (%p231) target = $region20
        $region19: #{tpu_custom_call.1} parent=11 // pred_region
          _
        $region20: #{tpu_custom_call.1} parent=11 // pred_fallthru
          _
        // Predicated region
        $region21: #{tpu_custom_call.1} parent=11 // pred_check
          %p234 = pneg %p126
        $region22: #{tpu_custom_call.1} parent=11 // pred_check_branch
          %236 = sbr.rel (%p234) target = $region24
        $region23: #{tpu_custom_call.1} parent=11 // pred_region
          %s238 = ssub.s32 256, 256
          %239 = vsyncadd [#allocation6], %s238
          %s240 = sshll.u32 [#allocation7], 4
          %s241 = int_to_ptr.vmem [resolvable:$true] %s240
          %246 = dma.hbm_to_vmem [thread:$0]  %s3, 256, %s241, [#allocation6], 64, 64, 4
        $region24: #{tpu_custom_call.1} parent=11 // pred_fallthru
          _
        // Predicated region
        $region25: #{tpu_custom_call.1} parent=11 // pred_check
          %p247 = pneg %p147
        $region26: #{tpu_custom_call.1} parent=11 // pred_check_branch
          %249 = sbr.rel (%p247) target = $region28
        $region27: #{tpu_custom_call.1} parent=11 // pred_region
          _
        $region28: #{tpu_custom_call.1} parent=11 // pred_fallthru
          _
      $region12: #{tpu_custom_call.1} parent=5 // pred_fallthru
        _
      %p250 = scmp.lt.s32.totalorder %s23, 2
      // Predicated region
      $region29: #{tpu_custom_call.1} parent=5 // pred_check
        %p251 = pneg %p250
      $region30: #{tpu_custom_call.1} parent=5 // pred_check_branch
        %253 = sbr.rel (%p251) target = $region32
      $region31: #{tpu_custom_call.1} parent=5 // pred_region
        // Predicated region
        $region33: #{tpu_custom_call.1} parent=31 // pred_check
          %p254 = pneg %p57
        $region34: #{tpu_custom_call.1} parent=31 // pred_check_branch
          %256 = sbr.rel (%p254) target = $region36
        $region35: #{tpu_custom_call.1} parent=31 // pred_region
          %s257 = sand.u32 %s47, 1
          %s258 = scalar_lea.sflag [#allocation3], %s257
          %s259 = sand.u32 %s47, 1
          %s260 = smul.addr %s259, 4
          %s261 = scalar_lea.vmem [#allocation2], %s260
          %s263 = ssub.s32 64, 64
          %264 = vsyncadd %s258, %s263
          %s265 = sadd.s32 %s31, %s30
          %s266 = smul.addr %s265, 64
          %s267 = scalar_lea.hbm %s0, %s266
          %s269 = sshll.u32 %s261, 4
          %s270 = int_to_ptr.vmem [resolvable:$true] %s269
          %272 = dma.hbm_to_vmem [thread:$0]  %s267, 64, %s270, %s258
        $region36: #{tpu_custom_call.1} parent=31 // pred_fallthru
          _
      $region32: #{tpu_custom_call.1} parent=5 // pred_fallthru
        _
      %p273 = scmp.le.s32.totalorder 1, %s23
      %p274 = scmp.lt.s32.totalorder %s23, 3
      %p275 = pnand %p273, %p274
      %p276 = pneg %p275
      // Predicated region
      $region37: #{tpu_custom_call.1} parent=5 // pred_check
        _
      $region38: #{tpu_custom_call.1} parent=5 // pred_check_branch
        %278 = sbr.rel (%p275) target = $region40
      $region39: #{tpu_custom_call.1} parent=5 // pred_region
        %s279 = ssub.s32 %s23, 1
        %s280 = sand.u32 %s50, 1
        %s281 = scalar_lea.sflag [#allocation3], %s280
        %s282 = sand.u32 %s50, 1
        %s283 = smul.addr %s282, 4
        %s284 = scalar_lea.vmem [#allocation2], %s283
        // Predicated region
        $region41: #{tpu_custom_call.1} parent=39 // pred_check
          %p285 = pneg %p63
        $region42: #{tpu_custom_call.1} parent=39 // pred_check_branch
          %287 = sbr.rel (%p285) target = $region44
        $region43: #{tpu_custom_call.1} parent=39 // pred_region
          %288 = dma.done %s281, 64
        $region44: #{tpu_custom_call.1} parent=39 // pred_fallthru
          _
        // Predicated region
        $region45: #{tpu_custom_call.1} parent=39 // pred_check
          %p289 = pneg %p84
        $region46: #{tpu_custom_call.1} parent=39 // pred_check_branch
          %291 = sbr.rel (%p289) target = $region48
        $region47: #{tpu_custom_call.1} parent=39 // pred_region
          %292 = dma.done [#allocation6], 256
        $region48: #{tpu_custom_call.1} parent=39 // pred_fallthru
          _
        // Predicated region
        $region49: #{tpu_custom_call.1} parent=39 // pred_check
          %p293 = pneg %p126
        $region50: #{tpu_custom_call.1} parent=39 // pred_check_branch
          %295 = sbr.rel (%p293) target = $region52
        $region51: #{tpu_custom_call.1} parent=39 // pred_region
          %296 = dma.done [#allocation6], 256
        $region52: #{tpu_custom_call.1} parent=39 // pred_fallthru
          _
        %s297 = sand.u32 %s50, 1
        %s298 = scalar_lea.sflag [#allocation3], %s297
        %s299 = sand.u32 %s50, 1
        %s300 = smul.addr %s299, 4
        %s301 = scalar_lea.vmem [#allocation2], %s300
        %p302 = pneg %p63
        %p303 = pneg %p60
        %p304 = pneg %p84
        %p305 = pneg %p81
        %p306 = pneg %p105
        %p307 = pneg %p102
        %p308 = pneg %p126
        %p309 = pneg %p123
        %p310 = pneg %p147
        %p311 = pneg %p144
        %p312 = pneg %p175
        %p313 = pneg %p172
        %s314 = sand.u32 %s162, 1
        %s315 = scalar_lea.sflag [#allocation4], %s314
        %s316 = sand.u32 %s162, 1
        %s317 = smul.addr %s316, 4
        %s318 = scalar_lea.vmem [#allocation8], %s317
        %p319 = pneg %p203
        %p320 = pneg %p200
        %s321 = sand.u32 %s190, 1
        %s322 = scalar_lea.sflag [#allocation10], %s321
        %s323 = sand.u32 %s190, 1
        %s324 = smul.addr %s323, 4
        %s325 = scalar_lea.vmem [#allocation9], %s324
        %v327 = vld [vmem:[%s284] sm:$0xf]
        %v328 = vld [vmem:[#allocation5] sm:$0xf]
        %v329 = vld [vmem:[#allocation5 + $0x4] sm:$0xf]
        %v330 = vld [vmem:[#allocation5 + $0x8] sm:$0xf]
        %v331 = vld [vmem:[#allocation5 + $0xc] sm:$0xf]
        %v332 = vld [vmem:[%s2] sm:$0x1]
        %v334 = vlaneseq
        %v335 = vshrl.u32 %v334, 7
        %v336 = vsub.s32 0, %v335
        %v337 = vrot.slane %v332, %v336
        %v343 = vunpack.c.l.b16 %v328
        %v344 = vunpack.c.l.b16 %v329
        %v345 = vunpack.c.l.b16 %v330
        %v346 = vunpack.c.l.b16 %v331
        %v347 = vpack.c.b16 %v344, %v343
        %v348 = vpack.c.b16 %v346, %v345
        %vm351 = vcmask 261120
        %v353 = vsel %vm351, %v327, 0
        %355 = vmatprep.subr.bf16.mxu0 0
        %356 = vmatpush1.bf16.msra.mxu0 0
        %357 = vmatprep.subr.bf16.mxu0 0
        %358 = vmatpush1.bf16.msra.mxu0 0
        %359 = vmatprep.subr.bf16.mxu0 0
        %360 = vmatpush1.bf16.msra.mxu0 0
        %361 = vmatprep.subr.bf16.mxu0 0
        %362 = vmatpush1.bf16.msra.mxu0 0
        %363 = vmatprep.subr.bf16.mxu0 0
        %364 = vmatpush1.bf16.msra.mxu0 0
        %365 = vmatprep.subr.bf16.mxu0 0
        %366 = vmatpush1.bf16.msra.mxu0 0
        %367 = vmatprep.subr.bf16.mxu0 0
        %368 = vmatpush1.bf16.msra.mxu0 %v348
        %369 = vmatprep.subr.bf16.mxu0 0
        %370 = vmatpush1.bf16.msra.mxu0 %v347
        %371 = vmatprep.subr.bf16.mxu0 0
        %372 = vmatpush2.bf16.msra.mxu0 0
        %373 = vmatprep.subr.bf16.mxu0 0
        %374 = vmatpush2.bf16.msra.mxu0 0
        %375 = vmatprep.subr.bf16.mxu0 0
        %376 = vmatpush2.bf16.msra.mxu0 0
        %377 = vmatprep.subr.bf16.mxu0 0
        %378 = vmatpush2.bf16.msra.mxu0 0
        %379 = vmatprep.subr.bf16.mxu0 0
        %380 = vmatpush2.bf16.msra.mxu0 0
        %381 = vmatprep.subr.bf16.mxu0 0
        %382 = vmatpush2.bf16.msra.mxu0 0
        %383 = vmatprep.subr.bf16.mxu0 0
        %384 = vmatpush2.bf16.msra.mxu0 0
        %385 = vmatprep.subr.bf16.mxu0 0
        %386 = vmatpush2.bf16.msra.mxu0 0
        %387 = vmatprep.mubr.bf16.mxu0 0
        %388 = vmatmul.mubr.bf16.gmra.mxu0 %v353
        %v389 = vpop.f32.mrf.mxu0
        %v390 = vadd.f32 %v337, %v389
        %v391 = vpop.f32.mrf.mxu0
        %v392 = vpop.f32.mrf.mxu0
        %v393 = vpop.f32.mrf.mxu0
        %394 = vdwg.mxu0
        %v395 = vpack.c.bf16 %v390, %v390
        %vm396 = vcmask 257024
        %397 = vst.msk [vmem:[%s318] sm:$0xf] %vm396, %v395
        %v398 = vld [vmem:[#allocation7] sm:$0xf]
        %v399 = vld [vmem:[#allocation7 + $0x4] sm:$0xf]
        %v400 = vld [vmem:[#allocation7 + $0x8] sm:$0xf]
        %v401 = vld [vmem:[#allocation7 + $0xc] sm:$0xf]
        %v402 = vld [vmem:[%s4] sm:$0x1]
        %v404 = vlaneseq
        %v405 = vshrl.u32 %v404, 7
        %v406 = vsub.s32 0, %v405
        %v407 = vrot.slane %v402, %v406
        %v413 = vunpack.c.l.b16 %v398
        %v414 = vunpack.c.l.b16 %v399
        %v415 = vunpack.c.l.b16 %v400
        %v416 = vunpack.c.l.b16 %v401
        %v417 = vpack.c.b16 %v414, %v413
        %v418 = vpack.c.b16 %v416, %v415
        %421 = vmatprep.subr.bf16.mxu0 0
        %422 = vmatpush1.bf16.msra.mxu0 0
        %423 = vmatprep.subr.bf16.mxu0 0
        %424 = vmatpush1.bf16.msra.mxu0 0
        %425 = vmatprep.subr.bf16.mxu0 0
        %426 = vmatpush1.bf16.msra.mxu0 0
        %427 = vmatprep.subr.bf16.mxu0 0
        %428 = vmatpush1.bf16.msra.mxu0 0
        %429 = vmatprep.subr.bf16.mxu0 0
        %430 = vmatpush1.bf16.msra.mxu0 0
        %431 = vmatprep.subr.bf16.mxu0 0
        %432 = vmatpush1.bf16.msra.mxu0 0
        %433 = vmatprep.subr.bf16.mxu0 0
        %434 = vmatpush1.bf16.msra.mxu0 %v418
        %435 = vmatprep.subr.bf16.mxu0 0
        %436 = vmatpush1.bf16.msra.mxu0 %v417
        %437 = vmatprep.subr.bf16.mxu0 0
        %438 = vmatpush2.bf16.msra.mxu0 0
        %439 = vmatprep.subr.bf16.mxu0 0
        %440 = vmatpush2.bf16.msra.mxu0 0
        %441 = vmatprep.subr.bf16.mxu0 0
        %442 = vmatpush2.bf16.msra.mxu0 0
        %443 = vmatprep.subr.bf16.mxu0 0
        %444 = vmatpush2.bf16.msra.mxu0 0
        %445 = vmatprep.subr.bf16.mxu0 0
        %446 = vmatpush2.bf16.msra.mxu0 0
        %447 = vmatprep.subr.bf16.mxu0 0
        %448 = vmatpush2.bf16.msra.mxu0 0
        %449 = vmatprep.subr.bf16.mxu0 0
        %450 = vmatpush2.bf16.msra.mxu0 0
        %451 = vmatprep.subr.bf16.mxu0 0
        %452 = vmatpush2.bf16.msra.mxu0 0
        %453 = vmatprep.mubr.bf16.mxu0 0
        %454 = vmatmul.mubr.bf16.gmra.mxu0 %v353
        %v455 = vpop.f32.mrf.mxu0
        %v456 = vadd.f32 %v407, %v455
        %v457 = vpop.f32.mrf.mxu0
        %v458 = vpop.f32.mrf.mxu0
        %v459 = vpop.f32.mrf.mxu0
        %460 = vdwg.mxu0
        %v461 = vpack.c.bf16 %v456, %v456
        %462 = vst.msk [vmem:[%s325] sm:$0xf] %vm396, %v461
        %s463 = sand.u32 %s162, 1
        %s464 = scalar_lea.sflag [#allocation4], %s463
        %s465 = sand.u32 %s162, 1
        %s466 = smul.addr %s465, 4
        %s467 = scalar_lea.vmem [#allocation8], %s466
        %s468 = sand.u32 %s190, 1
        %s469 = scalar_lea.sflag [#allocation10], %s468
        %s470 = sand.u32 %s190, 1
        %s471 = smul.addr %s470, 4
        %s472 = scalar_lea.vmem [#allocation9], %s471
        // Predicated region
        $region53: #{tpu_custom_call.1} parent=39 // pred_check
          %p473 = pneg %p172
        $region54: #{tpu_custom_call.1} parent=39 // pred_check_branch
          %475 = sbr.rel (%p473) target = $region56
        $region55: #{tpu_custom_call.1} parent=39 // pred_region
          %s477 = ssub.s32 64, 64
          %478 = vsyncadd %s464, %s477
          %s479 = sadd.s32 %s33, %s32
          %s480 = smul.addr %s479, 64
          %s481 = scalar_lea.hbm %s5, %s480
          %s483 = sshll.u32 %s467, 4
          %s484 = int_to_ptr.vmem [resolvable:$true] %s483
          %486 = dma.vmem_to_hbm [thread:$0]  %s484, 64, %s481, %s464
        $region56: #{tpu_custom_call.1} parent=39 // pred_fallthru
          _
        // Predicated region
        $region57: #{tpu_custom_call.1} parent=39 // pred_check
          %p487 = pneg %p200
        $region58: #{tpu_custom_call.1} parent=39 // pred_check_branch
          %489 = sbr.rel (%p487) target = $region60
        $region59: #{tpu_custom_call.1} parent=39 // pred_region
          %s491 = ssub.s32 64, 64
          %492 = vsyncadd %s469, %s491
          %s493 = sadd.s32 %s33, %s32
          %s494 = smul.addr %s493, 64
          %s495 = scalar_lea.hbm %s6, %s494
          %s497 = sshll.u32 %s472, 4
          %s498 = int_to_ptr.vmem [resolvable:$true] %s497
          %500 = dma.vmem_to_hbm [thread:$0]  %s498, 64, %s495, %s469
        $region60: #{tpu_custom_call.1} parent=39 // pred_fallthru
          _
      $region40: #{tpu_custom_call.1} parent=5 // pred_fallthru
        _
      %p501 = scmp.le.s32.totalorder 2, %s23
      // Predicated region
      $region61: #{tpu_custom_call.1} parent=5 // pred_check
        %p502 = pneg %p501
      $region62: #{tpu_custom_call.1} parent=5 // pred_check_branch
        %504 = sbr.rel (%p502) target = $region64
      $region63: #{tpu_custom_call.1} parent=5 // pred_region
        %s505 = ssub.s32 %s23, 2
        // Predicated region
        $region65: #{tpu_custom_call.1} parent=63 // pred_check
          %p506 = pneg %p178
        $region66: #{tpu_custom_call.1} parent=63 // pred_check_branch
          %508 = sbr.rel (%p506) target = $region68
        $region67: #{tpu_custom_call.1} parent=63 // pred_region
          %s509 = sand.u32 %s163, 1
          %s510 = scalar_lea.sflag [#allocation4], %s509
          %s511 = sand.u32 %s163, 1
          %s512 = smul.addr %s511, 4
          %s513 = scalar_lea.vmem [#allocation8], %s512
          %514 = dma.done %s510, 64
        $region68: #{tpu_custom_call.1} parent=63 // pred_fallthru
          _
        // Predicated region
        $region69: #{tpu_custom_call.1} parent=63 // pred_check
          %p515 = pneg %p206
        $region70: #{tpu_custom_call.1} parent=63 // pred_check_branch
          %517 = sbr.rel (%p515) target = $region72
        $region71: #{tpu_custom_call.1} parent=63 // pred_region
          %s518 = sand.u32 %s191, 1
          %s519 = scalar_lea.sflag [#allocation10], %s518
          %s520 = sand.u32 %s191, 1
          %s521 = smul.addr %s520, 4
          %s522 = scalar_lea.vmem [#allocation9], %s521
          %523 = dma.done %s519, 64
        $region72: #{tpu_custom_call.1} parent=63 // pred_fallthru
          _
      $region64: #{tpu_custom_call.1} parent=5 // pred_fallthru
        _
    $region6: #{tpu_custom_call.1} parent=1 // loop_footer
      %s27 = sadd.s32 1, %s23
    $region7: #{tpu_custom_call.1} parent=1 // loop_footer_branch
      %22 = sbr.rel target = $region3
    $region8: #{tpu_custom_call.1} parent=1 // loop_exit
      _
    %524 = vsyncpa [#allocation3], 1
    %s525 = scalar_lea.sflag [#allocation3], 1
    %526 = vsyncpa %s525, 1
    %527 = vsyncpa [#allocation6], 1
    %528 = vsyncpa [#allocation4], 1
    %s529 = scalar_lea.sflag [#allocation4], 1
    %530 = vsyncpa %s529, 1
    %531 = vsyncpa [#allocation10], 1
    %s532 = scalar_lea.sflag [#allocation10], 1
    %533 = vsyncpa %s532, 1

// kernel: tpu_custom_call.1
$region0: #{tpu_custom_call.1}
  #allocation0 [shape = 'u32[]', space=smem, size = 0x4, offset = 0x4, fixed_abs, tag = 'smem constant byte address 0x4 - core index']
  #allocation1 [shape = 'u32[144,128]{1,0:T(1,128)}', space=vmem, size = 0x12000, scoped, tag = 'internal scratch']
  %s0 = inlined_call_operand.hbm [shape: bf16[2,8,32], index: 0, kind: input, shape index: {}]
  %s1 = inlined_call_operand.hbm [shape: bf16[32,32], index: 1, kind: input, shape index: {}]
  %s2 = inlined_call_operand.vmem [shape: f32[1,32], index: 2, kind: input, shape index: {}]
  %s3 = inlined_call_operand.hbm [shape: bf16[32,32], index: 3, kind: input, shape index: {}]
  %s4 = inlined_call_operand.vmem [shape: f32[1,32], index: 4, kind: input, shape index: {}]
  %s5 = inlined_call_operand.hbm [shape: bf16[2,8,32], index: 5, kind: output, shape index: {0}]
  %s6 = inlined_call_operand.hbm [shape: bf16[2,8,32], index: 6, kind: output, shape index: {1}]
  %7 = xla_tuple %s5, %s6
  %s8 = sld [smem:[#allocation0]]
  $region73: #{tpu_custom_call.1} parent=0
    _
  %s10 = ssub.s32 1, %s8
  %s11 = scalar_select 0, %s10, %s8
  $region1: #{tpu_custom_call.1} parent=0
    #allocation2 [shape = 'u8[4096]{0}', space=vmem, size = 0x1000, scoped, tag = 'input window, operand 0']
    #allocation3 [shape = 's32[2]{0}', space=sflag, size = 0x8, scoped, tag = 'scoped memory for tpu_custom_call.1']
    #allocation4 [shape = 's32[2]{0}', space=sflag, size = 0x8, scoped, tag = 'scoped memory for tpu_custom_call.1']
    #allocation5 [shape = 'u8[8192]{0}', space=vmem, size = 0x2000, scoped, tag = 'input window, operand 1, single buffered']
    #allocation6 [shape = 's32[1]{0}', space=sflag, size = 0x4, scoped, tag = 'scoped memory for tpu_custom_call.1']
    #allocation7 [shape = 'u8[8192]{0}', space=vmem, size = 0x2000, scoped, tag = 'input window, operand 3, single buffered']
    #allocation8 [shape = 'u8[4096]{0}', space=vmem, size = 0x1000, scoped, tag = 'output window, operand 0']
    #allocation9 [shape = 'u8[4096]{0}', space=vmem, size = 0x1000, scoped, tag = 'output window, operand 1']
    #allocation10 [shape = 's32[2]{0}', space=sflag, size = 0x8, scoped, tag = 'scoped memory for tpu_custom_call.1']
    %12 = vsyncpa [#allocation3], 0
    %s13 = scalar_lea.sflag [#allocation3], 1
    %14 = vsyncpa %s13, 0
    %15 = vsyncpa [#allocation6], 0
    %16 = vsyncpa [#allocation4], 0
    %s17 = scalar_lea.sflag [#allocation4], 1
    %18 = vsyncpa %s17, 0
    %19 = vsyncpa [#allocation10], 0
    %s20 = scalar_lea.sflag [#allocation10], 1
    %21 = vsyncpa %s20, 0
    loop: start=0, step=1, limit=4
    $region2: #{tpu_custom_call.1} parent=1 // loop_pre_header
      _
    $region3: #{tpu_custom_call.1} parent=1 // loop_header
      %s23 = sphi 0, %s27
      %p24 = scmp.ge.s32.totalorder %s23, 4
      %s30 = sphi 0, %s42
      %s31 = sphi 0, %s38
      %s32 = sphi 0, %s30
      %s33 = sphi 0, %s31
      %s34 = sphi 0, %s32
      %s35 = sphi 0, %s33
      %s47 = sphi 0, %s49
      %s50 = sphi 0, %s47
      %s51 = sphi 0, %s50
      %s67 = sphi 0, %s51
      %s71 = sphi 0, %s71
      %s73 = sphi 0, %s71
      %s74 = sphi 0, %s73
      %s88 = sphi 0, %s74
      %s92 = sphi 0, %s92
      %s94 = sphi 0, %s92
      %s95 = sphi 0, %s94
      %s109 = sphi 0, %s95
      %s113 = sphi 0, %s113
      %s115 = sphi 0, %s113
      %s116 = sphi 0, %s115
      %s130 = sphi 0, %s116
      %s134 = sphi 0, %s134
      %s136 = sphi 0, %s134
      %s137 = sphi 0, %s136
      %s151 = sphi 0, %s137
      %s159 = sphi 0, %s161
      %s162 = sphi 0, %s159
      %s163 = sphi 0, %s162
      %s179 = sphi 0, %s163
      %s187 = sphi 0, %s189
      %s190 = sphi 0, %s187
      %s191 = sphi 0, %s190
      %s207 = sphi 0, %s191
    $region4: #{tpu_custom_call.1} parent=1 // loop_header_branch
      %26 = sbr.rel (%p24) target = $region8
    $region5: #{tpu_custom_call.1} parent=1 // loop_body
      %s28 = ssub.s32 %s23, 1
      %s29 = ssub.s32 %s23, 2
      %s36 = sadd.s32 1, %s31
      %p37 = scmp.ge.s32.totalorder %s36, 1
      %s38 = scalar_select %p37, 0, %s36
      %s39 = sadd.s32 1, %s30
      %s40 = scalar_select %p37, %s39, %s30
      %p41 = scmp.ge.s32.totalorder %s40, 2
      %s42 = scalar_select %p41, 0, %s40
      %s43 = ssub.s32 %s30, %s42
      %s44 = ssub.s32 %s31, %s38
      %s45 = sor.u32 %s43, %s44
      %p46 = scmp.eq.s32.totalorder %s45, 0
      %s48 = sadd.s32 %s47, 1
      %s49 = scalar_select %p46, %s47, %s48
      %p52 = pneg %p46
      %p53 = scmp.eq.s32.totalorder %s23, 1
      %p54 = por %p52, %p53
      %p55 = scmp.ne.s32.totalorder %s47, %s50
      %p56 = scmp.eq.s32.totalorder %s23, 0
      %p57 = por %p55, %p56
      %p58 = scmp.ne.s32.totalorder %s47, %s50
      %p59 = scmp.eq.s32.totalorder %s28, 1
      %p60 = por %p58, %p59
      %p61 = scmp.ne.s32.totalorder %s50, %s51
      %p62 = scmp.eq.s32.totalorder %s28, 0
      %p63 = por %p61, %p62
      %p64 = scmp.ne.s32.totalorder %s50, %s51
      %p65 = scmp.eq.s32.totalorder %s29, 1
      %p66 = por %p64, %p65
      %p68 = scmp.ne.s32.totalorder %s51, %s67
      %p69 = scmp.eq.s32.totalorder %s29, 0
      %p70 = por %p68, %p69
      %s72 = sadd.s32 %s71, 1
      %p75 = scmp.eq.s32.totalorder %s23, 1
      %p76 = scmp.ne.s32.totalorder %s71, %s73
      %p77 = scmp.eq.s32.totalorder %s23, 0
      %p78 = por %p76, %p77
      %p79 = scmp.ne.s32.totalorder %s71, %s73
      %p80 = scmp.eq.s32.totalorder %s28, 1
      %p81 = por %p79, %p80
      %p82 = scmp.ne.s32.totalorder %s73, %s74
      %p83 = scmp.eq.s32.totalorder %s28, 0
      %p84 = por %p82, %p83
      %p85 = scmp.ne.s32.totalorder %s73, %s74
      %p86 = scmp.eq.s32.totalorder %s29, 1
      %p87 = por %p85, %p86
      %p89 = scmp.ne.s32.totalorder %s74, %s88
      %p90 = scmp.eq.s32.totalorder %s29, 0
      %p91 = por %p89, %p90
      %s93 = sadd.s32 %s92, 1
      %p96 = scmp.eq.s32.totalorder %s23, 1
      %p97 = scmp.ne.s32.totalorder %s92, %s94
      %p98 = scmp.eq.s32.totalorder %s23, 0
      %p99 = por %p97, %p98
      %p100 = scmp.ne.s32.totalorder %s92, %s94
      %p101 = scmp.eq.s32.totalorder %s28, 1
      %p102 = por %p100, %p101
      %p103 = scmp.ne.s32.totalorder %s94, %s95
      %p104 = scmp.eq.s32.totalorder %s28, 0
      %p105 = por %p103, %p104
      %p106 = scmp.ne.s32.totalorder %s94, %s95
      %p107 = scmp.eq.s32.totalorder %s29, 1
      %p108 = por %p106, %p107
      %p110 = scmp.ne.s32.totalorder %s95, %s109
      %p111 = scmp.eq.s32.totalorder %s29, 0
      %p112 = por %p110, %p111
      %s114 = sadd.s32 %s113, 1
      %p117 = scmp.eq.s32.totalorder %s23, 1
      %p118 = scmp.ne.s32.totalorder %s113, %s115
      %p119 = scmp.eq.s32.totalorder %s23, 0
      %p120 = por %p118, %p119
      %p121 = scmp.ne.s32.totalorder %s113, %s115
      %p122 = scmp.eq.s32.totalorder %s28, 1
      %p123 = por %p121, %p122
      %p124 = scmp.ne.s32.totalorder %s115, %s116
      %p125 = scmp.eq.s32.totalorder %s28, 0
      %p126 = por %p124, %p125
      %p127 = scmp.ne.s32.totalorder %s115, %s116
      %p128 = scmp.eq.s32.totalorder %s29, 1
      %p129 = por %p127, %p128
      %p131 = scmp.ne.s32.totalorder %s116, %s130
      %p132 = scmp.eq.s32.totalorder %s29, 0
      %p133 = por %p131, %p132
      %s135 = sadd.s32 %s134, 1
      %p138 = scmp.eq.s32.totalorder %s23, 1
      %p139 = scmp.ne.s32.totalorder %s134, %s136
      %p140 = scmp.eq.s32.totalorder %s23, 0
      %p141 = por %p139, %p140
      %p142 = scmp.ne.s32.totalorder %s134, %s136
      %p143 = scmp.eq.s32.totalorder %s28, 1
      %p144 = por %p142, %p143
      %p145 = scmp.ne.s32.totalorder %s136, %s137
      %p146 = scmp.eq.s32.totalorder %s28, 0
      %p147 = por %p145, %p146
      %p148 = scmp.ne.s32.totalorder %s136, %s137
      %p149 = scmp.eq.s32.totalorder %s29, 1
      %p150 = por %p148, %p149
      %p152 = scmp.ne.s32.totalorder %s137, %s151
      %p153 = scmp.eq.s32.totalorder %s29, 0
      %p154 = por %p152, %p153
      %s155 = ssub.s32 %s30, %s42
      %s156 = ssub.s32 %s31, %s38
      %s157 = sor.u32 %s155, %s156
      %p158 = scmp.eq.s32.totalorder %s157, 0
      %s160 = sadd.s32 %s159, 1
      %s161 = scalar_select %p158, %s159, %s160
      %p164 = pneg %p158
      %p165 = scmp.eq.s32.totalorder %s23, 1
      %p166 = por %p164, %p165
      %p167 = scmp.ne.s32.totalorder %s159, %s162
      %p168 = scmp.eq.s32.totalorder %s23, 0
      %p169 = por %p167, %p168
      %p170 = scmp.ne.s32.totalorder %s159, %s162
      %p171 = scmp.eq.s32.totalorder %s28, 1
      %p172 = por %p170, %p171
      %p173 = scmp.ne.s32.totalorder %s162, %s163
      %p174 = scmp.eq.s32.totalorder %s28, 0
      %p175 = por %p173, %p174
      %p176 = scmp.ne.s32.totalorder %s162, %s163
      %p177 = scmp.eq.s32.totalorder %s29, 1
      %p178 = por %p176, %p177
      %p180 = scmp.ne.s32.totalorder %s163, %s179
      %p181 = scmp.eq.s32.totalorder %s29, 0
      %p182 = por %p180, %p181
      %s183 = ssub.s32 %s30, %s42
      %s184 = ssub.s32 %s31, %s38
      %s185 = sor.u32 %s183, %s184
      %p186 = scmp.eq.s32.totalorder %s185, 0
      %s188 = sadd.s32 %s187, 1
      %s189 = scalar_select %p186, %s187, %s188
      %p192 = pneg %p186
      %p193 = scmp.eq.s32.totalorder %s23, 1
      %p194 = por %p192, %p193
      %p195 = scmp.ne.s32.totalorder %s187, %s190
      %p196 = scmp.eq.s32.totalorder %s23, 0
      %p197 = por %p195, %p196
      %p198 = scmp.ne.s32.totalorder %s187, %s190
      %p199 = scmp.eq.s32.totalorder %s28, 1
      %p200 = por %p198, %p199
      %p201 = scmp.ne.s32.totalorder %s190, %s191
      %p202 = scmp.eq.s32.totalorder %s28, 0
      %p203 = por %p201, %p202
      %p204 = scmp.ne.s32.totalorder %s190, %s191
      %p205 = scmp.eq.s32.totalorder %s29, 1
      %p206 = por %p204, %p205
      %p208 = scmp.ne.s32.totalorder %s191, %s207
      %p209 = scmp.eq.s32.totalorder %s29, 0
      %p210 = por %p208, %p209
      %p211 = scmp.le.s32.totalorder 1, %s23
      %p212 = scmp.lt.s32.totalorder %s23, 3
      %p213 = pnand %p211, %p212
      %p214 = pneg %p213
      // Predicated region
      $region9: #{tpu_custom_call.1} parent=5 // pred_check
        _
      $region10: #{tpu_custom_call.1} parent=5 // pred_check_branch
        %216 = sbr.rel (%p213) target = $region12
      $region11: #{tpu_custom_call.1} parent=5 // pred_region
        %s217 = ssub.s32 %s23, 1
        // Predicated region
        $region13: #{tpu_custom_call.1} parent=11 // pred_check
          %p218 = pneg %p84
        $region14: #{tpu_custom_call.1} parent=11 // pred_check_branch
          %220 = sbr.rel (%p218) target = $region16
        $region15: #{tpu_custom_call.1} parent=11 // pred_region
          %s222 = ssub.s32 256, 256
          %223 = vsyncadd [#allocation6], %s222
          %s224 = sshll.u32 [#allocation5], 4
          %s225 = int_to_ptr.vmem [resolvable:$true] %s224
          %230 = dma.hbm_to_vmem [thread:$0]  %s1, 256, %s225, [#allocation6], 64, 64, 4
        $region16: #{tpu_custom_call.1} parent=11 // pred_fallthru
          _
        // Predicated region
        $region17: #{tpu_custom_call.1} parent=11 // pred_check
          %p231 = pneg %p105
        $region18: #{tpu_custom_call.1} parent=11 // pred_check_branch
          %233 = sbr.rel (%p231) target = $region20
        $region19: #{tpu_custom_call.1} parent=11 // pred_region
          _
        $region20: #{tpu_custom_call.1} parent=11 // pred_fallthru
          _
        // Predicated region
        $region21: #{tpu_custom_call.1} parent=11 // pred_check
          %p234 = pneg %p126
        $region22: #{tpu_custom_call.1} parent=11 // pred_check_branch
          %236 = sbr.rel (%p234) target = $region24
        $region23: #{tpu_custom_call.1} parent=11 // pred_region
          %s238 = ssub.s32 256, 256
          %239 = vsyncadd [#allocation6], %s238
          %s240 = sshll.u32 [#allocation7], 4
          %s241 = int_to_ptr.vmem [resolvable:$true] %s240
          %246 = dma.hbm_to_vmem [thread:$0]  %s3, 256, %s241, [#allocation6], 64, 64, 4
        $region24: #{tpu_custom_call.1} parent=11 // pred_fallthru
          _
        // Predicated region
        $region25: #{tpu_custom_call.1} parent=11 // pred_check
          %p247 = pneg %p147
        $region26: #{tpu_custom_call.1} parent=11 // pred_check_branch
          %249 = sbr.rel (%p247) target = $region28
        $region27: #{tpu_custom_call.1} parent=11 // pred_region
          _
        $region28: #{tpu_custom_call.1} parent=11 // pred_fallthru
          _
      $region12: #{tpu_custom_call.1} parent=5 // pred_fallthru
        _
      %p250 = scmp.lt.s32.totalorder %s23, 2
      // Predicated region
      $region29: #{tpu_custom_call.1} parent=5 // pred_check
        %p251 = pneg %p250
      $region30: #{tpu_custom_call.1} parent=5 // pred_check_branch
        %253 = sbr.rel (%p251) target = $region32
      $region31: #{tpu_custom_call.1} parent=5 // pred_region
        // Predicated region
        $region33: #{tpu_custom_call.1} parent=31 // pred_check
          %p254 = pneg %p57
        $region34: #{tpu_custom_call.1} parent=31 // pred_check_branch
          %256 = sbr.rel (%p254) target = $region36
        $region35: #{tpu_custom_call.1} parent=31 // pred_region
          %s257 = sand.u32 %s47, 1
          %s258 = scalar_lea.sflag [#allocation3], %s257
          %s259 = sand.u32 %s47, 1
          %s260 = smul.addr %s259, 4
          %s261 = scalar_lea.vmem [#allocation2], %s260
          %s263 = ssub.s32 64, 64
          %264 = vsyncadd %s258, %s263
          %s265 = sadd.s32 %s31, %s30
          %s266 = smul.addr %s265, 64
          %s267 = scalar_lea.hbm %s0, %s266
          %s269 = sshll.u32 %s261, 4
          %s270 = int_to_ptr.vmem [resolvable:$true] %s269
          %272 = dma.hbm_to_vmem [thread:$0]  %s267, 64, %s270, %s258
        $region36: #{tpu_custom_call.1} parent=31 // pred_fallthru
          _
      $region32: #{tpu_custom_call.1} parent=5 // pred_fallthru
        _
      %p273 = scmp.le.s32.totalorder 1, %s23
      %p274 = scmp.lt.s32.totalorder %s23, 3
      %p275 = pnand %p273, %p274
      %p276 = pneg %p275
      // Predicated region
      $region37: #{tpu_custom_call.1} parent=5 // pred_check
        _
      $region38: #{tpu_custom_call.1} parent=5 // pred_check_branch
        %278 = sbr.rel (%p275) target = $region40
      $region39: #{tpu_custom_call.1} parent=5 // pred_region
        %s279 = ssub.s32 %s23, 1
        %s280 = sand.u32 %s50, 1
        %s281 = scalar_lea.sflag [#allocation3], %s280
        %s282 = sand.u32 %s50, 1
        %s283 = smul.addr %s282, 4
        %s284 = scalar_lea.vmem [#allocation2], %s283
        // Predicated region
        $region41: #{tpu_custom_call.1} parent=39 // pred_check
          %p285 = pneg %p63
        $region42: #{tpu_custom_call.1} parent=39 // pred_check_branch
          %287 = sbr.rel (%p285) target = $region44
        $region43: #{tpu_custom_call.1} parent=39 // pred_region
          %288 = dma.done %s281, 64
        $region44: #{tpu_custom_call.1} parent=39 // pred_fallthru
          _
        // Predicated region
        $region45: #{tpu_custom_call.1} parent=39 // pred_check
          %p289 = pneg %p84
        $region46: #{tpu_custom_call.1} parent=39 // pred_check_branch
          %291 = sbr.rel (%p289) target = $region48
        $region47: #{tpu_custom_call.1} parent=39 // pred_region
          %292 = dma.done [#allocation6], 256
        $region48: #{tpu_custom_call.1} parent=39 // pred_fallthru
          _
        // Predicated region
        $region49: #{tpu_custom_call.1} parent=39 // pred_check
          %p293 = pneg %p126
        $region50: #{tpu_custom_call.1} parent=39 // pred_check_branch
          %295 = sbr.rel (%p293) target = $region52
        $region51: #{tpu_custom_call.1} parent=39 // pred_region
          %296 = dma.done [#allocation6], 256
        $region52: #{tpu_custom_call.1} parent=39 // pred_fallthru
          _
        %s297 = sand.u32 %s50, 1
        %s298 = scalar_lea.sflag [#allocation3], %s297
        %s299 = sand.u32 %s50, 1
        %s300 = smul.addr %s299, 4
        %s301 = scalar_lea.vmem [#allocation2], %s300
        %p302 = pneg %p63
        %p303 = pneg %p60
        %p304 = pneg %p84
        %p305 = pneg %p81
        %p306 = pneg %p105
        %p307 = pneg %p102
        %p308 = pneg %p126
        %p309 = pneg %p123
        %p310 = pneg %p147
        %p311 = pneg %p144
        %p312 = pneg %p175
        %p313 = pneg %p172
        %s314 = sand.u32 %s162, 1
        %s315 = scalar_lea.sflag [#allocation4], %s314
        %s316 = sand.u32 %s162, 1
        %s317 = smul.addr %s316, 4
        %s318 = scalar_lea.vmem [#allocation8], %s317
        %p319 = pneg %p203
        %p320 = pneg %p200
        %s321 = sand.u32 %s190, 1
        %s322 = scalar_lea.sflag [#allocation10], %s321
        %s323 = sand.u32 %s190, 1
        %s324 = smul.addr %s323, 4
        %s325 = scalar_lea.vmem [#allocation9], %s324
        %v327 = vld [vmem:[%s284] sm:$0xf]
        %v328 = vld [vmem:[#allocation5] sm:$0xf]
        %v329 = vld [vmem:[#allocation5 + $0x4] sm:$0xf]
        %v330 = vld [vmem:[#allocation5 + $0x8] sm:$0xf]
        %v331 = vld [vmem:[#allocation5 + $0xc] sm:$0xf]
        %v332 = vld [vmem:[%s2] sm:$0x1]
        %v334 = vlaneseq
        %v335 = vshrl.u32 %v334, 7
        %v336 = vsub.s32 0, %v335
        %v337 = vrot.slane %v332, %v336
        %v343 = vunpack.c.l.b16 %v328
        %v344 = vunpack.c.l.b16 %v329
        %v345 = vunpack.c.l.b16 %v330
        %v346 = vunpack.c.l.b16 %v331
        %v347 = vpack.c.b16 %v344, %v343
        %v348 = vpack.c.b16 %v346, %v345
        %vm351 = vcmask 261120
        %v353 = vsel %vm351, %v327, 0
        %355 = vmatprep.subr.bf16.mxu0 0
        %356 = vmatpush1.bf16.msra.mxu0 0
        %357 = vmatprep.subr.bf16.mxu0 0
        %358 = vmatpush1.bf16.msra.mxu0 0
        %359 = vmatprep.subr.bf16.mxu0 0
        %360 = vmatpush1.bf16.msra.mxu0 0
        %361 = vmatprep.subr.bf16.mxu0 0
        %362 = vmatpush1.bf16.msra.mxu0 0
        %363 = vmatprep.subr.bf16.mxu0 0
        %364 = vmatpush1.bf16.msra.mxu0 0
        %365 = vmatprep.subr.bf16.mxu0 0
        %366 = vmatpush1.bf16.msra.mxu0 0
        %367 = vmatprep.subr.bf16.mxu0 0
        %368 = vmatpush1.bf16.msra.mxu0 %v348
        %369 = vmatprep.subr.bf16.mxu0 0
        %370 = vmatpush1.bf16.msra.mxu0 %v347
        %371 = vmatprep.subr.bf16.mxu0 0
        %372 = vmatpush2.bf16.msra.mxu0 0
        %373 = vmatprep.subr.bf16.mxu0 0
        %374 = vmatpush2.bf16.msra.mxu0 0
        %375 = vmatprep.subr.bf16.mxu0 0
        %376 = vmatpush2.bf16.msra.mxu0 0
        %377 = vmatprep.subr.bf16.mxu0 0
        %378 = vmatpush2.bf16.msra.mxu0 0
        %379 = vmatprep.subr.bf16.mxu0 0
        %380 = vmatpush2.bf16.msra.mxu0 0
        %381 = vmatprep.subr.bf16.mxu0 0
        %382 = vmatpush2.bf16.msra.mxu0 0
        %383 = vmatprep.subr.bf16.mxu0 0
        %384 = vmatpush2.bf16.msra.mxu0 0
        %385 = vmatprep.subr.bf16.mxu0 0
        %386 = vmatpush2.bf16.msra.mxu0 0
        %387 = vmatprep.mubr.bf16.mxu0 0
        %388 = vmatmul.mubr.bf16.gmra.mxu0 %v353
        %v389 = vpop.f32.mrf.mxu0
        %v390 = vadd.f32 %v337, %v389
        %v391 = vpop.f32.mrf.mxu0
        %v392 = vpop.f32.mrf.mxu0
        %v393 = vpop.f32.mrf.mxu0
        %394 = vdwg.mxu0
        %v395 = vpack.c.bf16 %v390, %v390
        %vm396 = vcmask 257024
        %397 = vst.msk [vmem:[%s318] sm:$0xf] %vm396, %v395
        %v398 = vld [vmem:[#allocation7] sm:$0xf]
        %v399 = vld [vmem:[#allocation7 + $0x4] sm:$0xf]
        %v400 = vld [vmem:[#allocation7 + $0x8] sm:$0xf]
        %v401 = vld [vmem:[#allocation7 + $0xc] sm:$0xf]
        %v402 = vld [vmem:[%s4] sm:$0x1]
        %v404 = vlaneseq
        %v405 = vshrl.u32 %v404, 7
        %v406 = vsub.s32 0, %v405
        %v407 = vrot.slane %v402, %v406
        %v413 = vunpack.c.l.b16 %v398
        %v414 = vunpack.c.l.b16 %v399
        %v415 = vunpack.c.l.b16 %v400
        %v416 = vunpack.c.l.b16 %v401
        %v417 = vpack.c.b16 %v414, %v413
        %v418 = vpack.c.b16 %v416, %v415
        %421 = vmatprep.subr.bf16.mxu0 0
        %422 = vmatpush1.bf16.msra.mxu0 0
        %423 = vmatprep.subr.bf16.mxu0 0
        %424 = vmatpush1.bf16.msra.mxu0 0
        %425 = vmatprep.subr.bf16.mxu0 0
        %426 = vmatpush1.bf16.msra.mxu0 0
        %427 = vmatprep.subr.bf16.mxu0 0
        %428 = vmatpush1.bf16.msra.mxu0 0
        %429 = vmatprep.subr.bf16.mxu0 0
        %430 = vmatpush1.bf16.msra.mxu0 0
        %431 = vmatprep.subr.bf16.mxu0 0
        %432 = vmatpush1.bf16.msra.mxu0 0
        %433 = vmatprep.subr.bf16.mxu0 0
        %434 = vmatpush1.bf16.msra.mxu0 %v418
        %435 = vmatprep.subr.bf16.mxu0 0
        %436 = vmatpush1.bf16.msra.mxu0 %v417
        %437 = vmatprep.subr.bf16.mxu0 0
        %438 = vmatpush2.bf16.msra.mxu0 0
        %439 = vmatprep.subr.bf16.mxu0 0
        %440 = vmatpush2.bf16.msra.mxu0 0
        %441 = vmatprep.subr.bf16.mxu0 0
        %442 = vmatpush2.bf16.msra.mxu0 0
        %443 = vmatprep.subr.bf16.mxu0 0
        %444 = vmatpush2.bf16.msra.mxu0 0
        %445 = vmatprep.subr.bf16.mxu0 0
        %446 = vmatpush2.bf16.msra.mxu0 0
        %447 = vmatprep.subr.bf16.mxu0 0
        %448 = vmatpush2.bf16.msra.mxu0 0
        %449 = vmatprep.subr.bf16.mxu0 0
        %450 = vmatpush2.bf16.msra.mxu0 0
        %451 = vmatprep.subr.bf16.mxu0 0
        %452 = vmatpush2.bf16.msra.mxu0 0
        %453 = vmatprep.mubr.bf16.mxu0 0
        %454 = vmatmul.mubr.bf16.gmra.mxu0 %v353
        %v455 = vpop.f32.mrf.mxu0
        %v456 = vadd.f32 %v407, %v455
        %v457 = vpop.f32.mrf.mxu0
        %v458 = vpop.f32.mrf.mxu0
        %v459 = vpop.f32.mrf.mxu0
        %460 = vdwg.mxu0
        %v461 = vpack.c.bf16 %v456, %v456
        %462 = vst.msk [vmem:[%s325] sm:$0xf] %vm396, %v461
        %s463 = sand.u32 %s162, 1
        %s464 = scalar_lea.sflag [#allocation4], %s463
        %s465 = sand.u32 %s162, 1
        %s466 = smul.addr %s465, 4
        %s467 = scalar_lea.vmem [#allocation8], %s466
        %s468 = sand.u32 %s190, 1
        %s469 = scalar_lea.sflag [#allocation10], %s468
        %s470 = sand.u32 %s190, 1
        %s471 = smul.addr %s470, 4
        %s472 = scalar_lea.vmem [#allocation9], %s471
        // Predicated region
        $region53: #{tpu_custom_call.1} parent=39 // pred_check
          %p473 = pneg %p172
        $region54: #{tpu_custom_call.1} parent=39 // pred_check_branch
          %475 = sbr.rel (%p473) target = $region56
        $region55: #{tpu_custom_call.1} parent=39 // pred_region
          %s477 = ssub.s32 64, 64
          %478 = vsyncadd %s464, %s477
          %s479 = sadd.s32 %s33, %s32
          %s480 = smul.addr %s479, 64
          %s481 = scalar_lea.hbm %s5, %s480
          %s483 = sshll.u32 %s467, 4
          %s484 = int_to_ptr.vmem [resolvable:$true] %s483
          %486 = dma.vmem_to_hbm [thread:$0]  %s484, 64, %s481, %s464
        $region56: #{tpu_custom_call.1} parent=39 // pred_fallthru
          _
        // Predicated region
        $region57: #{tpu_custom_call.1} parent=39 // pred_check
          %p487 = pneg %p200
        $region58: #{tpu_custom_call.1} parent=39 // pred_check_branch
          %489 = sbr.rel (%p487) target = $region60
        $region59: #{tpu_custom_call.1} parent=39 // pred_region
          %s491 = ssub.s32 64, 64
          %492 = vsyncadd %s469, %s491
          %s493 = sadd.s32 %s33, %s32
          %s494 = smul.addr %s493, 64
          %s495 = scalar_lea.hbm %s6, %s494
          %s497 = sshll.u32 %s472, 4
          %s498 = int_to_ptr.vmem [resolvable:$true] %s497
          %500 = dma.vmem_to_hbm [thread:$0]  %s498, 64, %s495, %s469
        $region60: #{tpu_custom_call.1} parent=39 // pred_fallthru
          _
      $region40: #{tpu_custom_call.1} parent=5 // pred_fallthru
        _
      %p501 = scmp.le.s32.totalorder 2, %s23
      // Predicated region
      $region61: #{tpu_custom_call.1} parent=5 // pred_check
        %p502 = pneg %p501
      $region62: #{tpu_custom_call.1} parent=5 // pred_check_branch
        %504 = sbr.rel (%p502) target = $region64
      $region63: #{tpu_custom_call.1} parent=5 // pred_region
        %s505 = ssub.s32 %s23, 2
        // Predicated region
        $region65: #{tpu_custom_call.1} parent=63 // pred_check
          %p506 = pneg %p178
        $region66: #{tpu_custom_call.1} parent=63 // pred_check_branch
          %508 = sbr.rel (%p506) target = $region68
        $region67: #{tpu_custom_call.1} parent=63 // pred_region
          %s509 = sand.u32 %s163, 1
          %s510 = scalar_lea.sflag [#allocation4], %s509
          %s511 = sand.u32 %s163, 1
          %s512 = smul.addr %s511, 4
          %s513 = scalar_lea.vmem [#allocation8], %s512
          %514 = dma.done %s510, 64
        $region68: #{tpu_custom_call.1} parent=63 // pred_fallthru
          _
        // Predicated region
        $region69: #{tpu_custom_call.1} parent=63 // pred_check
          %p515 = pneg %p206
        $region70: #{tpu_custom_call.1} parent=63 // pred_check_branch
          %517 = sbr.rel (%p515) target = $region72
        $region71: #{tpu_custom_call.1} parent=63 // pred_region
          %s518 = sand.u32 %s191, 1
          %s519 = scalar_lea.sflag [#allocation10], %s518
          %s520 = sand.u32 %s191, 1
          %s521 = smul.addr %s520, 4
          %s522 = scalar_lea.vmem [#allocation9], %s521
          %523 = dma.done %s519, 64
        $region72: #{tpu_custom_call.1} parent=63 // pred_fallthru
          _
      $region64: #{tpu_custom_call.1} parent=5 // pred_fallthru
        _
    $region6: #{tpu_custom_call.1} parent=1 // loop_footer
      %s27 = sadd.s32 1, %s23
    $region7: #{tpu_custom_call.1} parent=1 // loop_footer_branch
      %22 = sbr.rel target = $region3
    $region8: #{tpu_custom_call.1} parent=1 // loop_exit
      _
    %524 = vsyncpa [#allocation3], 1
    %s525 = scalar_lea.sflag [#allocation3], 1
    %526 = vsyncpa %s525, 1
    %527 = vsyncpa [#allocation6], 1
    %528 = vsyncpa [#allocation4], 1
    %s529 = scalar_lea.sflag [#allocation4], 1
    %530 = vsyncpa %s529, 1
    %531 = vsyncpa [#allocation10], 1
    %s532 = scalar_lea.sflag [#allocation10], 1
    %533 = vsyncpa %s532, 1

</llo_original>
